<compile_context>
chip_gen: v5e
topology: v5e:2x2
jax: 0.10.0
libtpu: 0.0.40
codegen_flags: <defaults>
</compile_context>

<pallas_src>
import jax
import jax.numpy as jnp
from jax.experimental import pallas as pl
from jax.experimental.pallas import tpu as pltpu


_LANES = 128
_MAX_BLOCK_BYTES = 4 * 1024 * 1024     # per-buffer block cap (f32: 8192 rows)
_TARGET_GRID_STEPS = 8                 # keep a multi-step grid (v7x 2-TC + pipelining)
_VMEM_LIMIT_BYTES = 40 * 1024 * 1024   # 3 arrays * 2 bufs * 4 MiB = 24 MiB + headroom
_MIN_PALLAS_ELEMS = 16384              # below this, kernel overhead dominates -> XLA add


def _add_kernel(a_ref, b_ref, o_ref):
    o_ref[...] = a_ref[...] + b_ref[...]


def _sublane_multiple(dtype) -> int:
    # Minimal second-to-last-dim multiple for TPU tiling, by element width.
    itemsize = jnp.dtype(dtype).itemsize
    return {4: 8, 2: 16, 1: 32}.get(itemsize, 8)


def pallas_add(a, b):
    """Elementwise a + b via a tiled, double-buffered Pallas TPU kernel."""
    assert a.shape == b.shape and a.dtype == b.dtype
    orig_shape = a.shape
    n = a.size
    itemsize = jnp.dtype(a.dtype).itemsize

    # Fast path 1: tiny inputs.  pallas_call launch + per-step overhead would
    # be ~100% of the time; XLA's fused add is already at roofline.
    if n < _MIN_PALLAS_ELEMS:
        return a + b

    # Fast path 2: sizes not a multiple of 128 lanes.  Padding both inputs and
    # slicing the output would roughly double HBM traffic (useful traffic is
    # only 3n), so let XLA handle the rare unaligned case instead.
    if n % _LANES != 0:
        return a + b

    rows = n // _LANES
    sub = _sublane_multiple(a.dtype)

    # Block sizing: as large as possible (fewer pipeline steps => less ~0.35us
    # per-step overhead) subject to the VMEM budget, but small enough that the
    # grid still has ~_TARGET_GRID_STEPS steps so both v7x TensorCores get work
    # and the in/compute/out pipeline overlaps.  tile_r stays a multiple of the
    # dtype sublane quantum; a ragged last block is handled by Pallas masking.
    max_rows = max(sub, (_MAX_BLOCK_BYTES // (_LANES * itemsize)) // sub * sub)
    want_rows = pl.cdiv(rows, _TARGET_GRID_STEPS)
    tile_r = min(max_rows, max(sub, pl.cdiv(want_rows, sub) * sub))
    grid = (pl.cdiv(rows, tile_r),)

    a2 = a.reshape(rows, _LANES)   # lane-dense layout; reshape is a free bitcast
    b2 = b.reshape(rows, _LANES)

    out2 = pl.pallas_call(
        _add_kernel,
        out_shape=jax.ShapeDtypeStruct((rows, _LANES), a.dtype),
        grid=grid,
        in_specs=[
            pl.BlockSpec((tile_r, _LANES), lambda i: (i, 0)),
            pl.BlockSpec((tile_r, _LANES), lambda i: (i, 0)),
        ],
        out_specs=pl.BlockSpec((tile_r, _LANES), lambda i: (i, 0)),
        compiler_params=pltpu.CompilerParams(
            dimension_semantics=("parallel",),
            vmem_limit_bytes=_VMEM_LIMIT_BYTES,
        ),
        cost_estimate=pl.CostEstimate(
            flops=n, transcendentals=0, bytes_accessed=3 * n * itemsize),
    )(a2, b2)

    return out2.reshape(orig_shape)


class Add2:
    """JAX/Pallas equivalent of the PyTorch Add2 module."""

    def __init__(self, c1, index):
        # c1 is unused in the reference module as well (no parameters).
        self.index = index

    def __call__(self, x):
        # x = [tensor, list_of_tensors]; static index selection is glue.
        return pallas_add(x[0], x[1][self.index])


if __name__ == "__main__":
    key = jax.random.PRNGKey(0)
    keys = jax.random.split(key, 10)

    # 1) Module-level check at the spec's small shape (takes the small-input
    #    fast path — semantics identical).
    N, C, H, W = 2, 4, 16, 16
    x0 = jax.random.normal(keys[0], (N, C, H, W), dtype=jnp.float32)
    y0 = jax.random.normal(keys[1], (N, C, H, W), dtype=jnp.float32)
    y1 = jax.random.normal(keys[2], (N, C, H, W), dtype=jnp.float32)
    module = Add2(c1=C, index=1)
    out = jax.block_until_ready(module([x0, [y0, y1]]))
    assert out.shape == (N, C, H, W) and out.dtype == jnp.float32
    assert jnp.allclose(out, x0 + y1, atol=1e-6, rtol=1e-6)

    # 2) Pallas path: larger, 128-aligned feature map (multi-step grid).
    a_big = jax.random.normal(keys[3], (2, 32, 64, 64), dtype=jnp.float32)
    b_big = jax.random.normal(keys[4], (2, 32, 64, 64), dtype=jnp.float32)
    out_big = jax.block_until_ready(pallas_add(a_big, b_big))
    assert jnp.allclose(out_big, a_big + b_big, atol=1e-6, rtol=1e-6)

    # 3) Pallas path with a ragged (masked) last row-block: 10*13*128 = 16640
    #    elements -> 130 rows, not a multiple of the tile row count.
    a_rag = jax.random.normal(keys[5], (10, 13, 128), dtype=jnp.float32)
    b_rag = jax.random.normal(keys[6], (10, 13, 128), dtype=jnp.float32)
    out_rag = jax.block_until_ready(pallas_add(a_rag, b_rag))
    assert jnp.allclose(out_rag, a_rag + b_rag, atol=1e-6, rtol=1e-6)

    # 4) bf16 Pallas path (16-row sublane quantum).
    a_bf = jax.random.normal(keys[7], (2, 32, 32, 128), dtype=jnp.bfloat16)
    b_bf = jax.random.normal(keys[8], (2, 32, 32, 128), dtype=jnp.bfloat16)
    out_bf = jax.block_until_ready(pallas_add(a_bf, b_bf))
    assert jnp.allclose(out_bf.astype(jnp.float32),
                        (a_bf + b_bf).astype(jnp.float32), atol=1e-2, rtol=1e-2)

    # 5) Unaligned odd size exercises the XLA fallback path.
    a_odd = jax.random.normal(keys[9], (3, 5, 7), dtype=jnp.float32)
    b_odd = jax.random.normal(keys[0], (3, 5, 7), dtype=jnp.float32)
    out_odd = jax.block_until_ready(pallas_add(a_odd, b_odd))
    assert jnp.allclose(out_odd, a_odd + b_odd, atol=1e-6, rtol=1e-6)

    print("KERNEL_OK")
</pallas_src>

<mosaic_0001>
module attributes {stable_mosaic.version = 11 : i64} {
  func.func @_add_kernel(%arg0: i32, %arg1: memref<256x128xf32, #tpu.memory_space<vmem>>, %arg2: memref<256x128xf32, #tpu.memory_space<vmem>>, %arg3: memref<256x128xf32, #tpu.memory_space<vmem>>) attributes {dimension_semantics = [#tpu.dimension_semantics<parallel>], iteration_bounds = array<i64: 8>, scalar_prefetch = 0 : i64, scratch_operands = 0 : i64, tpu.core_type = #tpu.core_type<tc>, window_params = [{transform_indices = @transform_0, window_bounds = array<i64: 256, 128>}, {transform_indices = @transform_1, window_bounds = array<i64: 256, 128>}, {transform_indices = @transform_2, window_bounds = array<i64: 256, 128>}]} {
    %c0 = arith.constant 0 : index
    %c0_0 = arith.constant 0 : index
    %0 = vector.load %arg1[%c0, %c0_0] : memref<256x128xf32, #tpu.memory_space<vmem>>, vector<256x128xf32>
    %c0_1 = arith.constant 0 : index
    %c0_2 = arith.constant 0 : index
    %1 = vector.load %arg2[%c0_1, %c0_2] : memref<256x128xf32, #tpu.memory_space<vmem>>, vector<256x128xf32>
    %2 = arith.addf %0, %1 : vector<256x128xf32>
    %c0_3 = arith.constant 0 : index
    %c0_4 = arith.constant 0 : index
    %3 = vector.load %arg3[%c0_3, %c0_4] : memref<256x128xf32, #tpu.memory_space<vmem>>, vector<256x128xf32>
    tpu.vector_store %arg3[%c0_3, %c0_4], %2 {strides = array<i32>} : memref<256x128xf32, #tpu.memory_space<vmem>>, vector<256x128xf32>,
    return
  }
  func.func @transform_0(%arg0: i32) -> (i32, i32) {
    %c0_i32 = arith.constant 0 : i32
    %c0_i32_0 = arith.constant 0 : i32
    return %arg0, %c0_i32 : i32, i32
  }
  func.func @transform_1(%arg0: i32) -> (i32, i32) {
    %c0_i32 = arith.constant 0 : i32
    %c0_i32_0 = arith.constant 0 : i32
    return %arg0, %c0_i32 : i32, i32
  }
  func.func @transform_2(%arg0: i32) -> (i32, i32) {
    %c0_i32 = arith.constant 0 : i32
    %c0_i32_0 = arith.constant 0 : i32
    return %arg0, %c0_i32 : i32, i32
  }
}

</mosaic_0001>

<llo_original>
// kernel: tpu_custom_call.1
$region0: #{tpu_custom_call.1}
  #allocation0 [shape = 'u32[]', space=smem, size = 0x4, offset = 0x4, fixed_abs, tag = 'smem constant byte address 0x4 - core index']
  #allocation1 [shape = 'u32[72,128]{1,0:T(1,128)}', space=vmem, size = 0x9000, scoped, tag = 'internal scratch']
  %s0 = inlined_call_operand.hbm [shape: f32[2048,128], index: 0, kind: input, shape index: {}]
  %s1 = inlined_call_operand.hbm [shape: f32[2048,128], index: 1, kind: input, shape index: {}]
  %s2 = inlined_call_operand.hbm [shape: f32[2048,128], index: 2, kind: output, shape index: {}]
  %s3 = sld [smem:[#allocation0]]
  $region49: #{tpu_custom_call.1} parent=0
    _
  %s5 = ssub.s32 1, %s3
  %s6 = scalar_select 0, %s5, %s3
  $region1: #{tpu_custom_call.1} parent=0
    #allocation2 [shape = 'u8[262144]{0}', space=vmem, size = 0x40000, scoped, tag = 'input window, operand 0']
    #allocation3 [shape = 's32[2]{0}', space=sflag, size = 0x8, scoped, tag = 'scoped memory for tpu_custom_call.1']
    #allocation4 [shape = 's32[2]{0}', space=sflag, size = 0x8, scoped, tag = 'scoped memory for tpu_custom_call.1']
    #allocation5 [shape = 'u8[262144]{0}', space=vmem, size = 0x40000, scoped, tag = 'input window, operand 1']
    #allocation6 [shape = 's32[2]{0}', space=sflag, size = 0x8, scoped, tag = 'scoped memory for tpu_custom_call.1']
    #allocation7 [shape = 'u8[262144]{0}', space=vmem, size = 0x40000, scoped, tag = 'output window, operand 0']
    %7 = vsyncpa [#allocation3], 0
    %s8 = scalar_lea.sflag [#allocation3], 1
    %9 = vsyncpa %s8, 0
    %10 = vsyncpa [#allocation6], 0
    %s11 = scalar_lea.sflag [#allocation6], 1
    %12 = vsyncpa %s11, 0
    %13 = vsyncpa [#allocation4], 0
    %s14 = scalar_lea.sflag [#allocation4], 1
    %15 = vsyncpa %s14, 0
    loop: start=0, step=1, limit=10
    $region2: #{tpu_custom_call.1} parent=1 // loop_pre_header
      _
    $region3: #{tpu_custom_call.1} parent=1 // loop_header
      %s17 = sphi 0, %s21
      %p18 = scmp.ge.s32.totalorder %s17, 10
      %s27 = sphi 0, %s29
      %s30 = sphi 0, %s27
      %s31 = sphi 0, %s30
      %s47 = sphi 0, %s31
      %s53 = sphi 0, %s55
      %s56 = sphi 0, %s53
      %s57 = sphi 0, %s56
      %s73 = sphi 0, %s57
      %s79 = sphi 0, %s81
      %s82 = sphi 0, %s79
      %s83 = sphi 0, %s82
      %s99 = sphi 0, %s83
    $region4: #{tpu_custom_call.1} parent=1 // loop_header_branch
      %20 = sbr.rel (%p18) target = $region8
    $region5: #{tpu_custom_call.1} parent=1 // loop_body
      %s22 = ssub.s32 %s17, 1
      %s23 = ssub.s32 %s17, 2
      %s24 = sadd.s32 %s17, 1
      %s25 = ssub.s32 %s17, %s24
      %p26 = scmp.eq.s32.totalorder %s25, 0
      %s28 = sadd.s32 %s27, 1
      %s29 = scalar_select %p26, %s27, %s28
      %p32 = pneg %p26
      %p33 = scmp.eq.s32.totalorder %s17, 7
      %p34 = por %p32, %p33
      %p35 = scmp.ne.s32.totalorder %s27, %s30
      %p36 = scmp.eq.s32.totalorder %s17, 0
      %p37 = por %p35, %p36
      %p38 = scmp.ne.s32.totalorder %s27, %s30
      %p39 = scmp.eq.s32.totalorder %s22, 7
      %p40 = por %p38, %p39
      %p41 = scmp.ne.s32.totalorder %s30, %s31
      %p42 = scmp.eq.s32.totalorder %s22, 0
      %p43 = por %p41, %p42
      %p44 = scmp.ne.s32.totalorder %s30, %s31
      %p45 = scmp.eq.s32.totalorder %s23, 7
      %p46 = por %p44, %p45
      %p48 = scmp.ne.s32.totalorder %s31, %s47
      %p49 = scmp.eq.s32.totalorder %s23, 0
      %p50 = por %p48, %p49
      %s51 = ssub.s32 %s17, %s24
      %p52 = scmp.eq.s32.totalorder %s51, 0
      %s54 = sadd.s32 %s53, 1
      %s55 = scalar_select %p52, %s53, %s54
      %p58 = pneg %p52
      %p59 = scmp.eq.s32.totalorder %s17, 7
      %p60 = por %p58, %p59
      %p61 = scmp.ne.s32.totalorder %s53, %s56
      %p62 = scmp.eq.s32.totalorder %s17, 0
      %p63 = por %p61, %p62
      %p64 = scmp.ne.s32.totalorder %s53, %s56
      %p65 = scmp.eq.s32.totalorder %s22, 7
      %p66 = por %p64, %p65
      %p67 = scmp.ne.s32.totalorder %s56, %s57
      %p68 = scmp.eq.s32.totalorder %s22, 0
      %p69 = por %p67, %p68
      %p70 = scmp.ne.s32.totalorder %s56, %s57
      %p71 = scmp.eq.s32.totalorder %s23, 7
      %p72 = por %p70, %p71
      %p74 = scmp.ne.s32.totalorder %s57, %s73
      %p75 = scmp.eq.s32.totalorder %s23, 0
      %p76 = por %p74, %p75
      %s77 = ssub.s32 %s17, %s24
      %p78 = scmp.eq.s32.totalorder %s77, 0
      %s80 = sadd.s32 %s79, 1
      %s81 = scalar_select %p78, %s79, %s80
      %p84 = pneg %p78
      %p85 = scmp.eq.s32.totalorder %s17, 7
      %p86 = por %p84, %p85
      %p87 = scmp.ne.s32.totalorder %s79, %s82
      %p88 = scmp.eq.s32.totalorder %s17, 0
      %p89 = por %p87, %p88
      %p90 = scmp.ne.s32.totalorder %s79, %s82
      %p91 = scmp.eq.s32.totalorder %s22, 7
      %p92 = por %p90, %p91
      %p93 = scmp.ne.s32.totalorder %s82, %s83
      %p94 = scmp.eq.s32.totalorder %s22, 0
      %p95 = por %p93, %p94
      %p96 = scmp.ne.s32.totalorder %s82, %s83
      %p97 = scmp.eq.s32.totalorder %s23, 7
      %p98 = por %p96, %p97
      %p100 = scmp.ne.s32.totalorder %s83, %s99
      %p101 = scmp.eq.s32.totalorder %s23, 0
      %p102 = por %p100, %p101
      %p103 = scmp.le.s32.totalorder 1, %s17
      %p104 = scmp.lt.s32.totalorder %s17, 9
      %p105 = pnand %p103, %p104
      %p106 = pneg %p105
      // Predicated region
      $region9: #{tpu_custom_call.1} parent=5 // pred_check
        _
      $region10: #{tpu_custom_call.1} parent=5 // pred_check_branch
        %108 = sbr.rel (%p105) target = $region12
      $region11: #{tpu_custom_call.1} parent=5 // pred_region
        %s109 = ssub.s32 %s17, 1
      $region12: #{tpu_custom_call.1} parent=5 // pred_fallthru
        _
      %p110 = scmp.lt.s32.totalorder %s17, 8
      // Predicated region
      $region13: #{tpu_custom_call.1} parent=5 // pred_check
        %p111 = pneg %p110
      $region14: #{tpu_custom_call.1} parent=5 // pred_check_branch
        %113 = sbr.rel (%p111) target = $region16
      $region15: #{tpu_custom_call.1} parent=5 // pred_region
        // Predicated region
        $region17: #{tpu_custom_call.1} parent=15 // pred_check
          %p114 = pneg %p37
        $region18: #{tpu_custom_call.1} parent=15 // pred_check_branch
          %116 = sbr.rel (%p114) target = $region20
        $region19: #{tpu_custom_call.1} parent=15 // pred_region
          %s117 = sand.u32 %s27, 1
          %s118 = scalar_lea.sflag [#allocation3], %s117
          %s119 = sand.u32 %s27, 1
          %s120 = smul.addr %s119, 256
          %s121 = scalar_lea.vmem [#allocation2], %s120
          %s122 = smul.u32 32, %s17
          %124 = vsyncadd %s118, 0
          %s125 = smul.addr %s122, 8
          %s126 = scalar_lea.hbm %s0, %s125
          %s127 = sshll.u32 %s126, 4
          %s128 = int_to_ptr.hbm [resolvable:$true] %s127
          %s129 = sshll.u32 %s121, 4
          %s130 = int_to_ptr.vmem [resolvable:$true] %s129
          %135 = dma.hbm_to_vmem [thread:$0]  %s128, 4096, %s130, %s118, 128, 128, 8
        $region20: #{tpu_custom_call.1} parent=15 // pred_fallthru
          _
        // Predicated region
        $region21: #{tpu_custom_call.1} parent=15 // pred_check
          %p136 = pneg %p63
        $region22: #{tpu_custom_call.1} parent=15 // pred_check_branch
          %138 = sbr.rel (%p136) target = $region24
        $region23: #{tpu_custom_call.1} parent=15 // pred_region
          %s139 = sand.u32 %s53, 1
          %s140 = scalar_lea.sflag [#allocation6], %s139
          %s141 = sand.u32 %s53, 1
          %s142 = smul.addr %s141, 256
          %s143 = scalar_lea.vmem [#allocation5], %s142
          %s144 = smul.u32 32, %s17
          %146 = vsyncadd %s140, 0
          %s147 = smul.addr %s144, 8
          %s148 = scalar_lea.hbm %s1, %s147
          %s149 = sshll.u32 %s148, 4
          %s150 = int_to_ptr.hbm [resolvable:$true] %s149
          %s151 = sshll.u32 %s143, 4
          %s152 = int_to_ptr.vmem [resolvable:$true] %s151
          %157 = dma.hbm_to_vmem [thread:$0]  %s150, 4096, %s152, %s140, 128, 128, 8
        $region24: #{tpu_custom_call.1} parent=15 // pred_fallthru
          _
      $region16: #{tpu_custom_call.1} parent=5 // pred_fallthru
        _
      %p158 = scmp.le.s32.totalorder 1, %s17
      %p159 = scmp.lt.s32.totalorder %s17, 9
      %p160 = pnand %p158, %p159
      %p161 = pneg %p160
      // Predicated region
      $region25: #{tpu_custom_call.1} parent=5 // pred_check
        _
      $region26: #{tpu_custom_call.1} parent=5 // pred_check_branch
        %163 = sbr.rel (%p160) target = $region28
      $region27: #{tpu_custom_call.1} parent=5 // pred_region
        %s164 = ssub.s32 %s17, 1
        %s165 = sand.u32 %s30, 1
        %s166 = scalar_lea.sflag [#allocation3], %s165
        %s167 = sand.u32 %s30, 1
        %s168 = smul.addr %s167, 256
        %s169 = scalar_lea.vmem [#allocation2], %s168
        // Predicated region
        $region29: #{tpu_custom_call.1} parent=27 // pred_check
          %p170 = pneg %p43
        $region30: #{tpu_custom_call.1} parent=27 // pred_check_branch
          %172 = sbr.rel (%p170) target = $region32
        $region31: #{tpu_custom_call.1} parent=27 // pred_region
          %174 = dma.done %s166, 4096
        $region32: #{tpu_custom_call.1} parent=27 // pred_fallthru
          _
        %s175 = sand.u32 %s56, 1
        %s176 = scalar_lea.sflag [#allocation6], %s175
        %s177 = sand.u32 %s56, 1
        %s178 = smul.addr %s177, 256
        %s179 = scalar_lea.vmem [#allocation5], %s178
        // Predicated region
        $region33: #{tpu_custom_call.1} parent=27 // pred_check
          %p180 = pneg %p69
        $region34: #{tpu_custom_call.1} parent=27 // pred_check_branch
          %182 = sbr.rel (%p180) target = $region36
        $region35: #{tpu_custom_call.1} parent=27 // pred_region
          %184 = dma.done %s176, 4096
        $region36: #{tpu_custom_call.1} parent=27 // pred_fallthru
          _
        %s185 = sand.u32 %s30, 1
        %s186 = scalar_lea.sflag [#allocation3], %s185
        %s187 = sand.u32 %s30, 1
        %s188 = smul.addr %s187, 256
        %s189 = scalar_lea.vmem [#allocation2], %s188
        %p190 = pneg %p43
        %p191 = pneg %p40
        %s192 = sand.u32 %s56, 1
        %s193 = scalar_lea.sflag [#allocation6], %s192
        %s194 = sand.u32 %s56, 1
        %s195 = smul.addr %s194, 256
        %s196 = scalar_lea.vmem [#allocation5], %s195
        %p197 = pneg %p69
        %p198 = pneg %p66
        %p199 = pneg %p95
        %p200 = pneg %p92
        %s201 = sand.u32 %s82, 1
        %s202 = scalar_lea.sflag [#allocation4], %s201
        %s203 = sand.u32 %s82, 1
        %s204 = smul.addr %s203, 256
        %s205 = scalar_lea.vmem [#allocation7], %s204
        %s206 = smul.u32 32, %s22
        %s207 = smul.u32 32, %s22
        %s208 = smul.u32 32, %s22
        %v209 = vld [vmem:[%s169] sm:$0xff]
        %v210 = vld [vmem:[%s169 + $0x8] sm:$0xff]
        %v211 = vld [vmem:[%s169 + $0x10] sm:$0xff]
        %v212 = vld [vmem:[%s169 + $0x18] sm:$0xff]
        %v213 = vld [vmem:[%s169 + $0x20] sm:$0xff]
        %v214 = vld [vmem:[%s169 + $0x28] sm:$0xff]
        %v215 = vld [vmem:[%s169 + $0x30] sm:$0xff]
        %v216 = vld [vmem:[%s169 + $0x38] sm:$0xff]
        %v217 = vld [vmem:[%s169 + $0x40] sm:$0xff]
        %v218 = vld [vmem:[%s169 + $0x48] sm:$0xff]
        %v219 = vld [vmem:[%s169 + $0x50] sm:$0xff]
        %v220 = vld [vmem:[%s169 + $0x58] sm:$0xff]
        %v221 = vld [vmem:[%s169 + $0x60] sm:$0xff]
        %v222 = vld [vmem:[%s169 + $0x68] sm:$0xff]
        %v223 = vld [vmem:[%s169 + $0x70] sm:$0xff]
        %v224 = vld [vmem:[%s169 + $0x78] sm:$0xff]
        %v225 = vld [vmem:[%s169 + $0x80] sm:$0xff]
        %v226 = vld [vmem:[%s169 + $0x88] sm:$0xff]
        %v227 = vld [vmem:[%s169 + $0x90] sm:$0xff]
        %v228 = vld [vmem:[%s169 + $0x98] sm:$0xff]
        %v229 = vld [vmem:[%s169 + $0xa0] sm:$0xff]
        %v230 = vld [vmem:[%s169 + $0xa8] sm:$0xff]
        %v231 = vld [vmem:[%s169 + $0xb0] sm:$0xff]
        %v232 = vld [vmem:[%s169 + $0xb8] sm:$0xff]
        %v233 = vld [vmem:[%s169 + $0xc0] sm:$0xff]
        %v234 = vld [vmem:[%s169 + $0xc8] sm:$0xff]
        %v235 = vld [vmem:[%s169 + $0xd0] sm:$0xff]
        %v236 = vld [vmem:[%s169 + $0xd8] sm:$0xff]
        %v237 = vld [vmem:[%s169 + $0xe0] sm:$0xff]
        %v238 = vld [vmem:[%s169 + $0xe8] sm:$0xff]
        %v239 = vld [vmem:[%s169 + $0xf0] sm:$0xff]
        %v240 = vld [vmem:[%s169 + $0xf8] sm:$0xff]
        %v241 = vld [vmem:[%s179] sm:$0xff]
        %v242 = vld [vmem:[%s179 + $0x8] sm:$0xff]
        %v243 = vld [vmem:[%s179 + $0x10] sm:$0xff]
        %v244 = vld [vmem:[%s179 + $0x18] sm:$0xff]
        %v245 = vld [vmem:[%s179 + $0x20] sm:$0xff]
        %v246 = vld [vmem:[%s179 + $0x28] sm:$0xff]
        %v247 = vld [vmem:[%s179 + $0x30] sm:$0xff]
        %v248 = vld [vmem:[%s179 + $0x38] sm:$0xff]
        %v249 = vld [vmem:[%s179 + $0x40] sm:$0xff]
        %v250 = vld [vmem:[%s179 + $0x48] sm:$0xff]
        %v251 = vld [vmem:[%s179 + $0x50] sm:$0xff]
        %v252 = vld [vmem:[%s179 + $0x58] sm:$0xff]
        %v253 = vld [vmem:[%s179 + $0x60] sm:$0xff]
        %v254 = vld [vmem:[%s179 + $0x68] sm:$0xff]
        %v255 = vld [vmem:[%s179 + $0x70] sm:$0xff]
        %v256 = vld [vmem:[%s179 + $0x78] sm:$0xff]
        %v257 = vld [vmem:[%s179 + $0x80] sm:$0xff]
        %v258 = vld [vmem:[%s179 + $0x88] sm:$0xff]
        %v259 = vld [vmem:[%s179 + $0x90] sm:$0xff]
        %v260 = vld [vmem:[%s179 + $0x98] sm:$0xff]
        %v261 = vld [vmem:[%s179 + $0xa0] sm:$0xff]
        %v262 = vld [vmem:[%s179 + $0xa8] sm:$0xff]
        %v263 = vld [vmem:[%s179 + $0xb0] sm:$0xff]
        %v264 = vld [vmem:[%s179 + $0xb8] sm:$0xff]
        %v265 = vld [vmem:[%s179 + $0xc0] sm:$0xff]
        %v266 = vld [vmem:[%s179 + $0xc8] sm:$0xff]
        %v267 = vld [vmem:[%s179 + $0xd0] sm:$0xff]
        %v268 = vld [vmem:[%s179 + $0xd8] sm:$0xff]
        %v269 = vld [vmem:[%s179 + $0xe0] sm:$0xff]
        %v270 = vld [vmem:[%s179 + $0xe8] sm:$0xff]
        %v271 = vld [vmem:[%s179 + $0xf0] sm:$0xff]
        %v272 = vld [vmem:[%s179 + $0xf8] sm:$0xff]
        %v273 = vadd.f32 %v209, %v241
        %v274 = vadd.f32 %v210, %v242
        %v275 = vadd.f32 %v211, %v243
        %v276 = vadd.f32 %v212, %v244
        %v277 = vadd.f32 %v213, %v245
        %v278 = vadd.f32 %v214, %v246
        %v279 = vadd.f32 %v215, %v247
        %v280 = vadd.f32 %v216, %v248
        %v281 = vadd.f32 %v217, %v249
        %v282 = vadd.f32 %v218, %v250
        %v283 = vadd.f32 %v219, %v251
        %v284 = vadd.f32 %v220, %v252
        %v285 = vadd.f32 %v221, %v253
        %v286 = vadd.f32 %v222, %v254
        %v287 = vadd.f32 %v223, %v255
        %v288 = vadd.f32 %v224, %v256
        %v289 = vadd.f32 %v225, %v257
        %v290 = vadd.f32 %v226, %v258
        %v291 = vadd.f32 %v227, %v259
        %v292 = vadd.f32 %v228, %v260
        %v293 = vadd.f32 %v229, %v261
        %v294 = vadd.f32 %v230, %v262
        %v295 = vadd.f32 %v231, %v263
        %v296 = vadd.f32 %v232, %v264
        %v297 = vadd.f32 %v233, %v265
        %v298 = vadd.f32 %v234, %v266
        %v299 = vadd.f32 %v235, %v267
        %v300 = vadd.f32 %v236, %v268
        %v301 = vadd.f32 %v237, %v269
        %v302 = vadd.f32 %v238, %v270
        %v303 = vadd.f32 %v239, %v271
        %v304 = vadd.f32 %v240, %v272
        %305 = vst [vmem:[%s205] sm:$0xff] %v273
        %306 = vst [vmem:[%s205 + $0x8] sm:$0xff] %v274
        %307 = vst [vmem:[%s205 + $0x10] sm:$0xff] %v275
        %308 = vst [vmem:[%s205 + $0x18] sm:$0xff] %v276
        %309 = vst [vmem:[%s205 + $0x20] sm:$0xff] %v277
        %310 = vst [vmem:[%s205 + $0x28] sm:$0xff] %v278
        %311 = vst [vmem:[%s205 + $0x30] sm:$0xff] %v279
        %312 = vst [vmem:[%s205 + $0x38] sm:$0xff] %v280
        %313 = vst [vmem:[%s205 + $0x40] sm:$0xff] %v281
        %314 = vst [vmem:[%s205 + $0x48] sm:$0xff] %v282
        %315 = vst [vmem:[%s205 + $0x50] sm:$0xff] %v283
        %316 = vst [vmem:[%s205 + $0x58] sm:$0xff] %v284
        %317 = vst [vmem:[%s205 + $0x60] sm:$0xff] %v285
        %318 = vst [vmem:[%s205 + $0x68] sm:$0xff] %v286
        %319 = vst [vmem:[%s205 + $0x70] sm:$0xff] %v287
        %320 = vst [vmem:[%s205 + $0x78] sm:$0xff] %v288
        %321 = vst [vmem:[%s205 + $0x80] sm:$0xff] %v289
        %322 = vst [vmem:[%s205 + $0x88] sm:$0xff] %v290
        %323 = vst [vmem:[%s205 + $0x90] sm:$0xff] %v291
        %324 = vst [vmem:[%s205 + $0x98] sm:$0xff] %v292
        %325 = vst [vmem:[%s205 + $0xa0] sm:$0xff] %v293
        %326 = vst [vmem:[%s205 + $0xa8] sm:$0xff] %v294
        %327 = vst [vmem:[%s205 + $0xb0] sm:$0xff] %v295
        %328 = vst [vmem:[%s205 + $0xb8] sm:$0xff] %v296
        %329 = vst [vmem:[%s205 + $0xc0] sm:$0xff] %v297
        %330 = vst [vmem:[%s205 + $0xc8] sm:$0xff] %v298
        %331 = vst [vmem:[%s205 + $0xd0] sm:$0xff] %v299
        %332 = vst [vmem:[%s205 + $0xd8] sm:$0xff] %v300
        %333 = vst [vmem:[%s205 + $0xe0] sm:$0xff] %v301
        %334 = vst [vmem:[%s205 + $0xe8] sm:$0xff] %v302
        %335 = vst [vmem:[%s205 + $0xf0] sm:$0xff] %v303
        %336 = vst [vmem:[%s205 + $0xf8] sm:$0xff] %v304
        %s337 = sand.u32 %s82, 1
        %s338 = scalar_lea.sflag [#allocation4], %s337
        %s339 = sand.u32 %s82, 1
        %s340 = smul.addr %s339, 256
        %s341 = scalar_lea.vmem [#allocation7], %s340
        // Predicated region
        $region37: #{tpu_custom_call.1} parent=27 // pred_check
          %p342 = pneg %p92
        $region38: #{tpu_custom_call.1} parent=27 // pred_check_branch
          %344 = sbr.rel (%p342) target = $region40
        $region39: #{tpu_custom_call.1} parent=27 // pred_region
          %s345 = smul.u32 32, %s22
          %347 = vsyncadd %s338, 0
          %s348 = smul.addr %s345, 8
          %s349 = scalar_lea.hbm %s2, %s348
          %s350 = sshll.u32 %s341, 4
          %s351 = int_to_ptr.vmem [resolvable:$true] %s350
          %s352 = sshll.u32 %s349, 4
          %s353 = int_to_ptr.hbm [resolvable:$true] %s352
          %358 = dma.vmem_to_hbm [thread:$0]  %s351, 4096, %s353, %s338, 128, 128, 8
        $region40: #{tpu_custom_call.1} parent=27 // pred_fallthru
          _
      $region28: #{tpu_custom_call.1} parent=5 // pred_fallthru
        _
      %p359 = scmp.le.s32.totalorder 2, %s17
      // Predicated region
      $region41: #{tpu_custom_call.1} parent=5 // pred_check
        %p360 = pneg %p359
      $region42: #{tpu_custom_call.1} parent=5 // pred_check_branch
        %362 = sbr.rel (%p360) target = $region44
      $region43: #{tpu_custom_call.1} parent=5 // pred_region
        %s363 = ssub.s32 %s17, 2
        // Predicated region
        $region45: #{tpu_custom_call.1} parent=43 // pred_check
          %p364 = pneg %p98
        $region46: #{tpu_custom_call.1} parent=43 // pred_check_branch
          %366 = sbr.rel (%p364) target = $region48
        $region47: #{tpu_custom_call.1} parent=43 // pred_region
          %s367 = sand.u32 %s83, 1
          %s368 = scalar_lea.sflag [#allocation4], %s367
          %s369 = sand.u32 %s83, 1
          %s370 = smul.addr %s369, 256
          %s371 = scalar_lea.vmem [#allocation7], %s370
          %373 = dma.done %s368, 4096
        $region48: #{tpu_custom_call.1} parent=43 // pred_fallthru
          _
      $region44: #{tpu_custom_call.1} parent=5 // pred_fallthru
        _
    $region6: #{tpu_custom_call.1} parent=1 // loop_footer
      %s21 = sadd.s32 1, %s17
    $region7: #{tpu_custom_call.1} parent=1 // loop_footer_branch
      %16 = sbr.rel target = $region3
    $region8: #{tpu_custom_call.1} parent=1 // loop_exit
      _
    %374 = vsyncpa [#allocation3], 1
    %s375 = scalar_lea.sflag [#allocation3], 1
    %376 = vsyncpa %s375, 1
    %377 = vsyncpa [#allocation6], 1
    %s378 = scalar_lea.sflag [#allocation6], 1
    %379 = vsyncpa %s378, 1
    %380 = vsyncpa [#allocation4], 1
    %s381 = scalar_lea.sflag [#allocation4], 1
    %382 = vsyncpa %s381, 1

</llo_original>
